<compile_context>
chip_gen: v7x
topology: tpu7x:2x2x1
jax: 0.10.0
libtpu: 0.0.40
codegen_flags: <defaults>
</compile_context>

<pallas_src>
import jax
import jax.numpy as jnp
from jax.experimental import pallas as pl
from jax.experimental.pallas import tpu as pltpu


# ---------------------------------------------------------------------------
# Fused whole-network Pallas kernel
# ---------------------------------------------------------------------------
def _make_gcn_kernel(layer_plan):
    """Kernel args: adj (bf16), x, (W_i bf16, affine_i f32) * L, out.

    layer_plan[i] is True when layer i aggregates before transforming
    (i.e. when C_out > C_in).  affine_i is (2, C_out): row 0 = scale,
    row 1 = shift (conv bias already folded into the shift on the host).
    """
    num_layers = len(layer_plan)

    def kernel(a_ref, x_ref, *refs):
        o_ref = refs[-1]
        param_refs = refs[:-1]

        # Degree of (A + I), reduced once on the XLU; A itself is never
        # materialized as a normalized f32 matrix.
        deg = jnp.sum(a_ref[...].astype(jnp.float32), axis=1, keepdims=True) + 1.0
        d_inv_sqrt = jax.lax.rsqrt(deg)                       # (N, 1), deg >= 1

        def aggregate(v):
            # A_norm @ v  ==  d * ((A + I) @ (d * v)),  d = D^-1/2
            t = v * d_inv_sqrt                                # f32 (N, C)
            agg = jnp.dot(a_ref[...], t.astype(jnp.bfloat16),
                          preferred_element_type=jnp.float32) + t
            return agg * d_inv_sqrt

        def transform(v, w_ref):
            return jnp.dot(v.astype(jnp.bfloat16), w_ref[...],
                           preferred_element_type=jnp.float32)

        h = x_ref[...].astype(jnp.float32)                    # (N, C_in)
        for li in range(num_layers):
            w_ref = param_refs[2 * li]
            aff = param_refs[2 * li + 1][...]                 # (2, C_out)
            scale = aff[0:1, :]
            shift = aff[1:2, :]

            if layer_plan[li]:            # channels grow: aggregate first
                h = transform(aggregate(h), w_ref)
            else:                         # channels shrink/equal: transform first
                h = aggregate(transform(h, w_ref))

            # fused epilogue: BatchNorm (eval) + conv bias folded into shift
            h = h * scale + shift
            if li < num_layers - 1:
                h = jnp.maximum(h, 0.0)
                # dropout: identity in eval mode
                # TODO(synk): training-mode dropout mask not emitted.

        o_ref[...] = h.astype(o_ref.dtype)

    return kernel


def gcn_normalize(adj):
    """A_norm = D^-1/2 (A + I) D^-1/2 (used only by the pure-JAX reference)."""
    n = adj.shape[0]
    a = adj.astype(jnp.float32) + jnp.eye(n, dtype=jnp.float32)
    deg = jnp.sum(a, axis=1)
    d_inv_sqrt = jnp.where(deg > 0, 1.0 / jnp.sqrt(deg), 0.0)
    return a * d_inv_sqrt[:, None] * d_inv_sqrt[None, :]


def gcn_forward(params, x, adj, *, bn_eps=1e-5):
    """Single fused pallas_call for the whole GCN forward (eval mode)."""
    num_layers = len(params["convs"])
    n = x.shape[0]
    out_ch = params["convs"][-1]["weight"].shape[1]
    out_ch_padded = max(128, ((out_ch + 127) // 128) * 128)   # lane-dense store

    adj_b = adj.astype(jnp.bfloat16)        # raw 0/1 adjacency; exact in bf16
    x = x.astype(jnp.float32)

    operands = [adj_b, x]
    in_specs = [
        pl.BlockSpec(adj_b.shape, lambda i: (0, 0)),
        pl.BlockSpec(x.shape, lambda i: (0, 0)),
    ]

    layer_plan = []
    for li in range(num_layers):
        conv = params["convs"][li]
        w = conv["weight"].astype(jnp.float32)
        bias = conv["bias"].astype(jnp.float32)
        c_in, c_out = w.shape
        layer_plan.append(c_out > c_in)     # aggregate first when channels grow

        if li < num_layers - 1:
            bn = params["bns"][li]
            scale = bn["weight"] / jnp.sqrt(bn["running_var"] + bn_eps)
            shift = bn["bias"] - bn["running_mean"] * scale
        else:
            scale = jnp.ones((c_out,), jnp.float32)
            shift = jnp.zeros((c_out,), jnp.float32)
        # fold conv bias into the shift: (acc + b)*s + t == acc*s + (b*s + t)
        shift = bias * scale + shift

        if li == num_layers - 1 and c_out < out_ch_padded:
            # pad the last layer to a multiple of 128 output channels so the
            # final store is unmasked / lane-dense; wrapper slices it back.
            pad = out_ch_padded - c_out
            w = jnp.pad(w, ((0, 0), (0, pad)))
            scale = jnp.pad(scale, (0, pad), constant_values=1.0)
            shift = jnp.pad(shift, (0, pad))

        affine = jnp.stack([scale, shift], axis=0)            # (2, C_out[_padded])

        operands += [w.astype(jnp.bfloat16), affine]
        in_specs += [
            pl.BlockSpec(w.shape, lambda i: (0, 0)),
            pl.BlockSpec(affine.shape, lambda i: (0, 0)),
        ]

    # Raise scoped VMEM only when the resident footprint would exceed the most
    # conservative default (16 MiB on v5e); keep headroom below physical VMEM.
    bytes_in = sum(int(op.size) * op.dtype.itemsize for op in operands)
    bytes_out = n * out_ch_padded * 4
    approx_vmem = 2 * (bytes_in + bytes_out) + 8 * n * 128 * 4
    vmem_limit = None
    if approx_vmem > (16 << 20):
        vmem_limit = min(int(approx_vmem), 100 << 20)

    kernel = _make_gcn_kernel(tuple(layer_plan))

    out = pl.pallas_call(
        kernel,
        out_shape=jax.ShapeDtypeStruct((n, out_ch_padded), jnp.float32),
        grid_spec=pltpu.PrefetchScalarGridSpec(
            num_scalar_prefetch=0,
            grid=(1,),                     # whole problem is one VMEM-resident block
            in_specs=in_specs,
            out_specs=pl.BlockSpec((n, out_ch_padded), lambda i: (0, 0)),
        ),
        compiler_params=pltpu.CompilerParams(
            dimension_semantics=("arbitrary",),
            vmem_limit_bytes=vmem_limit,
        ),
    )(*operands)

    return out[:, :out_ch]


# ---------------------------------------------------------------------------
# GCN model (parameters built deterministically in-script)
# ---------------------------------------------------------------------------
def init_gcn_params(key, in_channels, hidden_channels, out_channels, num_layers):
    dims = [in_channels] + [hidden_channels] * (num_layers - 1) + [out_channels]
    params = {"convs": [], "bns": []}
    for li in range(num_layers):
        key, kw = jax.random.split(key)
        fan_in, fan_out = dims[li], dims[li + 1]
        w = jax.random.normal(kw, (fan_in, fan_out), jnp.float32) / jnp.sqrt(fan_in)
        b = jnp.zeros((fan_out,), jnp.float32)
        params["convs"].append({"weight": w, "bias": b})
        if li < num_layers - 1:
            key, k1, k2 = jax.random.split(key, 3)
            params["bns"].append({
                "weight": jnp.ones((fan_out,), jnp.float32),
                "bias": jnp.zeros((fan_out,), jnp.float32),
                "running_mean": 0.1 * jax.random.normal(k1, (fan_out,), jnp.float32),
                "running_var": 1.0 + 0.1 * jax.random.uniform(k2, (fan_out,)),
            })
    return params


# ---------------------------------------------------------------------------
# Pure-JAX f32 reference for a sanity check
# ---------------------------------------------------------------------------
def gcn_forward_ref(params, x, adj, *, bn_eps=1e-5):
    a_norm = gcn_normalize(adj)
    num_layers = len(params["convs"])
    for li in range(num_layers - 1):
        conv, bn = params["convs"][li], params["bns"][li]
        x = a_norm @ (x @ conv["weight"]) + conv["bias"]
        x = (x - bn["running_mean"]) / jnp.sqrt(bn["running_var"] + bn_eps)
        x = x * bn["weight"] + bn["bias"]
        x = jnp.maximum(x, 0.0)
    conv = params["convs"][-1]
    return a_norm @ (x @ conv["weight"]) + conv["bias"]


if __name__ == "__main__":
    N_NODES = 128
    IN_CH, HIDDEN, OUT_CH = 16, 32, 8
    NUM_LAYERS = 3
    DROPOUT = 0.5  # no-op in eval mode

    key = jax.random.PRNGKey(0)
    k_x, k_adj, k_p = jax.random.split(key, 3)

    x = jax.random.normal(k_x, (N_NODES, IN_CH), jnp.float32)
    # random symmetric 0/1 adjacency
    upper = (jax.random.uniform(k_adj, (N_NODES, N_NODES)) < 0.1).astype(jnp.float32)
    adj = jnp.triu(upper, 1)
    adj = adj + adj.T

    params = init_gcn_params(k_p, IN_CH, HIDDEN, OUT_CH, NUM_LAYERS)

    out = gcn_forward(params, x, adj)
    out = jax.block_until_ready(out)

    ref = gcn_forward_ref(params, x, adj)
    assert out.shape == (N_NODES, OUT_CH)
    # bf16 matmul inputs with f32 accumulation -> loosened tolerance vs f32 ref
    max_err = float(jnp.max(jnp.abs(out - ref)))
    assert jnp.allclose(out, ref, atol=5e-2, rtol=5e-2), (
        f"mismatch vs reference (max abs err {max_err:.2e})")

    print("KERNEL_OK")
</pallas_src>

<mosaic_0001>
module attributes {stable_mosaic.version = 11 : i64} {
  func.func @kernel(%arg0: i32, %arg1: memref<128x128xbf16, #tpu.memory_space<vmem>>, %arg2: memref<128x16xf32, #tpu.memory_space<vmem>>, %arg3: memref<16x32xbf16, #tpu.memory_space<vmem>>, %arg4: memref<2x32xf32, #tpu.memory_space<vmem>>, %arg5: memref<32x32xbf16, #tpu.memory_space<vmem>>, %arg6: memref<2x32xf32, #tpu.memory_space<vmem>>, %arg7: memref<32x128xbf16, #tpu.memory_space<vmem>>, %arg8: memref<2x128xf32, #tpu.memory_space<vmem>>, %arg9: memref<128x128xf32, #tpu.memory_space<vmem>>) attributes {dimension_semantics = [#tpu.dimension_semantics<arbitrary>], iteration_bounds = array<i64: 1>, scalar_prefetch = 0 : i64, scratch_operands = 0 : i64, tpu.core_type = #tpu.core_type<tc>, window_params = [{pipeline_mode = #tpu.pipeline_mode<synchronous>, transform_indices = @transform_0, window_bounds = array<i64: 128, 128>}, {pipeline_mode = #tpu.pipeline_mode<synchronous>, transform_indices = @transform_1, window_bounds = array<i64: 128, 16>}, {pipeline_mode = #tpu.pipeline_mode<synchronous>, transform_indices = @transform_2, window_bounds = array<i64: 16, 32>}, {pipeline_mode = #tpu.pipeline_mode<synchronous>, transform_indices = @transform_3, window_bounds = array<i64: 2, 32>}, {pipeline_mode = #tpu.pipeline_mode<synchronous>, transform_indices = @transform_4, window_bounds = array<i64: 32, 32>}, {pipeline_mode = #tpu.pipeline_mode<synchronous>, transform_indices = @transform_5, window_bounds = array<i64: 2, 32>}, {pipeline_mode = #tpu.pipeline_mode<synchronous>, transform_indices = @transform_6, window_bounds = array<i64: 32, 128>}, {pipeline_mode = #tpu.pipeline_mode<synchronous>, transform_indices = @transform_7, window_bounds = array<i64: 2, 128>}, {pipeline_mode = #tpu.pipeline_mode<synchronous>, transform_indices = @transform_8, window_bounds = array<i64: 128, 128>}]} {
    %c0 = arith.constant 0 : index
    %c0_0 = arith.constant 0 : index
    %0 = vector.load %arg1[%c0, %c0_0] : memref<128x128xbf16, #tpu.memory_space<vmem>>, vector<128x128xbf16>
    %1 = arith.extf %0 : vector<128x128xbf16> to vector<128x128xf32>
    %cst = arith.constant dense<0.000000e+00> : vector<128xf32>
    %2 = vector.multi_reduction <add>, %1, %cst [1] : vector<128x128xf32> to vector<128xf32>
    %3 = vector.shape_cast %2 : vector<128xf32> to vector<128x1xf32>
    %cst_1 = arith.constant 1.000000e+00 : f32
    %4 = vector.broadcast %cst_1 : f32 to vector<128x1xf32>
    %5 = arith.addf %3, %4 : vector<128x1xf32>
    %6 = math.rsqrt %5 : vector<128x1xf32>
    %c0_2 = arith.constant 0 : index
    %c0_3 = arith.constant 0 : index
    %7 = vector.load %arg2[%c0_2, %c0_3] : memref<128x16xf32, #tpu.memory_space<vmem>>, vector<128x16xf32>
    %c0_4 = arith.constant 0 : index
    %c0_5 = arith.constant 0 : index
    %8 = vector.load %arg4[%c0_4, %c0_5] : memref<2x32xf32, #tpu.memory_space<vmem>>, vector<2x32xf32>
    %9 = vector.extract_strided_slice %8 {offsets = [0, 0], sizes = [1, 32], strides = [1, 1]} : vector<2x32xf32> to vector<1x32xf32>
    %10 = vector.extract_strided_slice %8 {offsets = [1, 0], sizes = [1, 32], strides = [1, 1]} : vector<2x32xf32> to vector<1x32xf32>
    %11 = vector.broadcast %6 : vector<128x1xf32> to vector<128x16xf32>
    %12 = arith.mulf %7, %11 : vector<128x16xf32>
    %c0_6 = arith.constant 0 : index
    %c0_7 = arith.constant 0 : index
    %13 = vector.load %arg1[%c0_6, %c0_7] : memref<128x128xbf16, #tpu.memory_space<vmem>>, vector<128x128xbf16>
    %14 = arith.truncf %12 : vector<128x16xf32> to vector<128x16xbf16>
    %cst_8 = arith.constant dense<0.000000e+00> : vector<128x16xf32>
    %15 = tpu.matmul %13, %14, %cst_8 {dimension_numbers = #tpu.dot_dimension_numbers<[1], [0], [0], [1], [0, 0, 1, 1], [], []>} : vector<128x128xbf16>, vector<128x16xbf16>, vector<128x16xf32> -> vector<128x16xf32>
    %16 = arith.addf %15, %12 : vector<128x16xf32>
    %17 = vector.broadcast %6 : vector<128x1xf32> to vector<128x16xf32>
    %18 = arith.mulf %16, %17 : vector<128x16xf32>
    %19 = arith.truncf %18 : vector<128x16xf32> to vector<128x16xbf16>
    %c0_9 = arith.constant 0 : index
    %c0_10 = arith.constant 0 : index
    %20 = vector.load %arg3[%c0_9, %c0_10] : memref<16x32xbf16, #tpu.memory_space<vmem>>, vector<16x32xbf16>
    %cst_11 = arith.constant dense<0.000000e+00> : vector<128x32xf32>
    %21 = tpu.matmul %19, %20, %cst_11 {dimension_numbers = #tpu.dot_dimension_numbers<[1], [0], [0], [1], [0, 0, 1, 1], [], []>} : vector<128x16xbf16>, vector<16x32xbf16>, vector<128x32xf32> -> vector<128x32xf32>
    %22 = vector.broadcast %9 : vector<1x32xf32> to vector<128x32xf32>
    %23 = arith.mulf %21, %22 : vector<128x32xf32>
    %24 = vector.broadcast %10 : vector<1x32xf32> to vector<128x32xf32>
    %25 = arith.addf %23, %24 : vector<128x32xf32>
    %cst_12 = arith.constant 0.000000e+00 : f32
    %26 = vector.broadcast %cst_12 : f32 to vector<128x32xf32>
    %27 = arith.maximumf %25, %26 : vector<128x32xf32>
    %c0_13 = arith.constant 0 : index
    %c0_14 = arith.constant 0 : index
    %28 = vector.load %arg6[%c0_13, %c0_14] : memref<2x32xf32, #tpu.memory_space<vmem>>, vector<2x32xf32>
    %29 = vector.extract_strided_slice %28 {offsets = [0, 0], sizes = [1, 32], strides = [1, 1]} : vector<2x32xf32> to vector<1x32xf32>
    %30 = vector.extract_strided_slice %28 {offsets = [1, 0], sizes = [1, 32], strides = [1, 1]} : vector<2x32xf32> to vector<1x32xf32>
    %31 = arith.truncf %27 : vector<128x32xf32> to vector<128x32xbf16>
    %c0_15 = arith.constant 0 : index
    %c0_16 = arith.constant 0 : index
    %32 = vector.load %arg5[%c0_15, %c0_16] : memref<32x32xbf16, #tpu.memory_space<vmem>>, vector<32x32xbf16>
    %cst_17 = arith.constant dense<0.000000e+00> : vector<128x32xf32>
    %33 = tpu.matmul %31, %32, %cst_17 {dimension_numbers = #tpu.dot_dimension_numbers<[1], [0], [0], [1], [0, 0, 1, 1], [], []>} : vector<128x32xbf16>, vector<32x32xbf16>, vector<128x32xf32> -> vector<128x32xf32>
    %34 = vector.broadcast %6 : vector<128x1xf32> to vector<128x32xf32>
    %35 = arith.mulf %33, %34 : vector<128x32xf32>
    %c0_18 = arith.constant 0 : index
    %c0_19 = arith.constant 0 : index
    %36 = vector.load %arg1[%c0_18, %c0_19] : memref<128x128xbf16, #tpu.memory_space<vmem>>, vector<128x128xbf16>
    %37 = arith.truncf %35 : vector<128x32xf32> to vector<128x32xbf16>
    %cst_20 = arith.constant dense<0.000000e+00> : vector<128x32xf32>
    %38 = tpu.matmul %36, %37, %cst_20 {dimension_numbers = #tpu.dot_dimension_numbers<[1], [0], [0], [1], [0, 0, 1, 1], [], []>} : vector<128x128xbf16>, vector<128x32xbf16>, vector<128x32xf32> -> vector<128x32xf32>
    %39 = arith.addf %38, %35 : vector<128x32xf32>
    %40 = vector.broadcast %6 : vector<128x1xf32> to vector<128x32xf32>
    %41 = arith.mulf %39, %40 : vector<128x32xf32>
    %42 = vector.broadcast %29 : vector<1x32xf32> to vector<128x32xf32>
    %43 = arith.mulf %41, %42 : vector<128x32xf32>
    %44 = vector.broadcast %30 : vector<1x32xf32> to vector<128x32xf32>
    %45 = arith.addf %43, %44 : vector<128x32xf32>
    %cst_21 = arith.constant 0.000000e+00 : f32
    %46 = vector.broadcast %cst_21 : f32 to vector<128x32xf32>
    %47 = arith.maximumf %45, %46 : vector<128x32xf32>
    %c0_22 = arith.constant 0 : index
    %c0_23 = arith.constant 0 : index
    %48 = vector.load %arg8[%c0_22, %c0_23] : memref<2x128xf32, #tpu.memory_space<vmem>>, vector<2x128xf32>
    %49 = vector.extract_strided_slice %48 {offsets = [0, 0], sizes = [1, 128], strides = [1, 1]} : vector<2x128xf32> to vector<1x128xf32>
    %50 = vector.extract_strided_slice %48 {offsets = [1, 0], sizes = [1, 128], strides = [1, 1]} : vector<2x128xf32> to vector<1x128xf32>
    %51 = arith.truncf %47 : vector<128x32xf32> to vector<128x32xbf16>
    %c0_24 = arith.constant 0 : index
    %c0_25 = arith.constant 0 : index
    %52 = vector.load %arg7[%c0_24, %c0_25] : memref<32x128xbf16, #tpu.memory_space<vmem>>, vector<32x128xbf16>
    %cst_26 = arith.constant dense<0.000000e+00> : vector<128x128xf32>
    %53 = tpu.matmul %51, %52, %cst_26 {dimension_numbers = #tpu.dot_dimension_numbers<[1], [0], [0], [1], [0, 0, 1, 1], [], []>} : vector<128x32xbf16>, vector<32x128xbf16>, vector<128x128xf32> -> vector<128x128xf32>
    %54 = vector.broadcast %6 : vector<128x1xf32> to vector<128x128xf32>
    %55 = arith.mulf %53, %54 : vector<128x128xf32>
    %c0_27 = arith.constant 0 : index
    %c0_28 = arith.constant 0 : index
    %56 = vector.load %arg1[%c0_27, %c0_28] : memref<128x128xbf16, #tpu.memory_space<vmem>>, vector<128x128xbf16>
    %57 = arith.truncf %55 : vector<128x128xf32> to vector<128x128xbf16>
    %cst_29 = arith.constant dense<0.000000e+00> : vector<128x128xf32>
    %58 = tpu.matmul %56, %57, %cst_29 {dimension_numbers = #tpu.dot_dimension_numbers<[1], [0], [0], [1], [0, 0, 1, 1], [], []>} : vector<128x128xbf16>, vector<128x128xbf16>, vector<128x128xf32> -> vector<128x128xf32>
    %59 = arith.addf %58, %55 : vector<128x128xf32>
    %60 = vector.broadcast %6 : vector<128x1xf32> to vector<128x128xf32>
    %61 = arith.mulf %59, %60 : vector<128x128xf32>
    %62 = vector.broadcast %49 : vector<1x128xf32> to vector<128x128xf32>
    %63 = arith.mulf %61, %62 : vector<128x128xf32>
    %64 = vector.broadcast %50 : vector<1x128xf32> to vector<128x128xf32>
    %65 = arith.addf %63, %64 : vector<128x128xf32>
    %c0_30 = arith.constant 0 : index
    %c0_31 = arith.constant 0 : index
    %66 = vector.load %arg9[%c0_30, %c0_31] : memref<128x128xf32, #tpu.memory_space<vmem>>, vector<128x128xf32>
    tpu.vector_store %arg9[%c0_30, %c0_31], %65 {strides = array<i32>} : memref<128x128xf32, #tpu.memory_space<vmem>>, vector<128x128xf32>,
    return
  }
  func.func @transform_0(%arg0: i32) -> (i32, i32) {
    %c0_i32 = arith.constant 0 : i32
    %c0_i32_0 = arith.constant 0 : i32
    %c0_i32_1 = arith.constant 0 : i32
    return %c0_i32, %c0_i32_0 : i32, i32
  }
  func.func @transform_1(%arg0: i32) -> (i32, i32) {
    %c0_i32 = arith.constant 0 : i32
    %c0_i32_0 = arith.constant 0 : i32
    %c0_i32_1 = arith.constant 0 : i32
    return %c0_i32, %c0_i32_0 : i32, i32
  }
  func.func @transform_2(%arg0: i32) -> (i32, i32) {
    %c0_i32 = arith.constant 0 : i32
    %c0_i32_0 = arith.constant 0 : i32
    %c0_i32_1 = arith.constant 0 : i32
    return %c0_i32, %c0_i32_0 : i32, i32
  }
  func.func @transform_3(%arg0: i32) -> (i32, i32) {
    %c0_i32 = arith.constant 0 : i32
    %c0_i32_0 = arith.constant 0 : i32
    %c0_i32_1 = arith.constant 0 : i32
    return %c0_i32, %c0_i32_0 : i32, i32
  }
  func.func @transform_4(%arg0: i32) -> (i32, i32) {
    %c0_i32 = arith.constant 0 : i32
    %c0_i32_0 = arith.constant 0 : i32
    %c0_i32_1 = arith.constant 0 : i32
    return %c0_i32, %c0_i32_0 : i32, i32
  }
  func.func @transform_5(%arg0: i32) -> (i32, i32) {
    %c0_i32 = arith.constant 0 : i32
    %c0_i32_0 = arith.constant 0 : i32
    %c0_i32_1 = arith.constant 0 : i32
    return %c0_i32, %c0_i32_0 : i32, i32
  }
  func.func @transform_6(%arg0: i32) -> (i32, i32) {
    %c0_i32 = arith.constant 0 : i32
    %c0_i32_0 = arith.constant 0 : i32
    %c0_i32_1 = arith.constant 0 : i32
    return %c0_i32, %c0_i32_0 : i32, i32
  }
  func.func @transform_7(%arg0: i32) -> (i32, i32) {
    %c0_i32 = arith.constant 0 : i32
    %c0_i32_0 = arith.constant 0 : i32
    %c0_i32_1 = arith.constant 0 : i32
    return %c0_i32, %c0_i32_0 : i32, i32
  }
  func.func @transform_8(%arg0: i32) -> (i32, i32) {
    %c0_i32 = arith.constant 0 : i32
    %c0_i32_0 = arith.constant 0 : i32
    %c0_i32_1 = arith.constant 0 : i32
    return %c0_i32, %c0_i32_0 : i32, i32
  }
}

</mosaic_0001>

<llo_original>
// kernel: tpu_custom_call.1
$region0: #{tpu_custom_call.1}
  #allocation0 [shape = 'u32[]', space=smem, size = 0x4, offset = 0x4, fixed_abs, tag = 'smem constant byte address 0x4 - core index']
  #allocation1 [shape = 'u32[144,128]{1,0:T(1,128)}', space=vmem, size = 0x12000, scoped, tag = 'internal scratch']
  %s0 = inlined_call_operand.vmem [shape: bf16[128,128], index: 0, kind: input, shape index: {}]
  %s1 = inlined_call_operand.vmem [shape: f32[128,16], index: 1, kind: input, shape index: {}]
  %s2 = inlined_call_operand.vmem [shape: bf16[16,32], index: 2, kind: input, shape index: {}]
  %s3 = inlined_call_operand.vmem [shape: f32[2,32], index: 3, kind: input, shape index: {}]
  %s4 = inlined_call_operand.vmem [shape: bf16[32,32], index: 4, kind: input, shape index: {}]
  %s5 = inlined_call_operand.vmem [shape: f32[2,32], index: 5, kind: input, shape index: {}]
  %s6 = inlined_call_operand.vmem [shape: bf16[32,128], index: 6, kind: input, shape index: {}]
  %s7 = inlined_call_operand.vmem [shape: f32[2,128], index: 7, kind: input, shape index: {}]
  %s8 = inlined_call_operand.hbm [shape: f32[128,128], index: 8, kind: output, shape index: {}]
  %s9 = sld [smem:[#allocation0]]
  $region42: #{tpu_custom_call.1} parent=0
    _
  %s11 = ssub.s32 1, %s9
  %s12 = scalar_select 0, %s11, %s9
  $region1: #{tpu_custom_call.1} parent=0
    #allocation2 [shape = 'u8[65536]{0}', space=vmem, size = 0x10000, scoped, tag = 'output window, operand 0, single buffered']
    #allocation3 [shape = 's32[1]{0}', space=sflag, size = 0x4, scoped, tag = 'scoped memory for tpu_custom_call.1']
    %13 = vsyncpa [#allocation3], 0
    // Predicated region
    $region2: #{tpu_custom_call.1} parent=1 // pred_check
      _
    $region3: #{tpu_custom_call.1} parent=1 // pred_check_branch
      %15 = sbr.rel (0) target = $region5
    $region4: #{tpu_custom_call.1} parent=1 // pred_region
      _
    $region5: #{tpu_custom_call.1} parent=1 // pred_fallthru
      _
    // Predicated region
    $region6: #{tpu_custom_call.1} parent=1 // pred_check
      _
    $region7: #{tpu_custom_call.1} parent=1 // pred_check_branch
      %17 = sbr.rel (0) target = $region9
    $region8: #{tpu_custom_call.1} parent=1 // pred_region
      _
    $region9: #{tpu_custom_call.1} parent=1 // pred_fallthru
      _
    // Predicated region
    $region10: #{tpu_custom_call.1} parent=1 // pred_check
      _
    $region11: #{tpu_custom_call.1} parent=1 // pred_check_branch
      %19 = sbr.rel (0) target = $region13
    $region12: #{tpu_custom_call.1} parent=1 // pred_region
      _
    $region13: #{tpu_custom_call.1} parent=1 // pred_fallthru
      _
    // Predicated region
    $region14: #{tpu_custom_call.1} parent=1 // pred_check
      _
    $region15: #{tpu_custom_call.1} parent=1 // pred_check_branch
      %21 = sbr.rel (0) target = $region17
    $region16: #{tpu_custom_call.1} parent=1 // pred_region
      _
    $region17: #{tpu_custom_call.1} parent=1 // pred_fallthru
      _
    // Predicated region
    $region18: #{tpu_custom_call.1} parent=1 // pred_check
      _
    $region19: #{tpu_custom_call.1} parent=1 // pred_check_branch
      %23 = sbr.rel (0) target = $region21
    $region20: #{tpu_custom_call.1} parent=1 // pred_region
      _
    $region21: #{tpu_custom_call.1} parent=1 // pred_fallthru
      _
    // Predicated region
    $region22: #{tpu_custom_call.1} parent=1 // pred_check
      _
    $region23: #{tpu_custom_call.1} parent=1 // pred_check_branch
      %25 = sbr.rel (0) target = $region25
    $region24: #{tpu_custom_call.1} parent=1 // pred_region
      _
    $region25: #{tpu_custom_call.1} parent=1 // pred_fallthru
      _
    // Predicated region
    $region26: #{tpu_custom_call.1} parent=1 // pred_check
      _
    $region27: #{tpu_custom_call.1} parent=1 // pred_check_branch
      %27 = sbr.rel (0) target = $region29
    $region28: #{tpu_custom_call.1} parent=1 // pred_region
      _
    $region29: #{tpu_custom_call.1} parent=1 // pred_fallthru
      _
    // Predicated region
    $region30: #{tpu_custom_call.1} parent=1 // pred_check
      _
    $region31: #{tpu_custom_call.1} parent=1 // pred_check_branch
      %29 = sbr.rel (0) target = $region33
    $region32: #{tpu_custom_call.1} parent=1 // pred_region
      _
    $region33: #{tpu_custom_call.1} parent=1 // pred_fallthru
      _
    %v31 = vld [vmem:[%s0] sm:$0xf]
    %v32 = vld [vmem:[%s0 + $0x4] sm:$0xf]
    %v33 = vld [vmem:[%s0 + $0x8] sm:$0xf]
    %v34 = vld [vmem:[%s0 + $0xc] sm:$0xf]
    %v35 = vld [vmem:[%s0 + $0x10] sm:$0xf]
    %v36 = vld [vmem:[%s0 + $0x14] sm:$0xf]
    %v37 = vld [vmem:[%s0 + $0x18] sm:$0xf]
    %v38 = vld [vmem:[%s0 + $0x1c] sm:$0xf]
    %v39 = vld [vmem:[%s0 + $0x20] sm:$0xf]
    %v40 = vld [vmem:[%s0 + $0x24] sm:$0xf]
    %v41 = vld [vmem:[%s0 + $0x28] sm:$0xf]
    %v42 = vld [vmem:[%s0 + $0x2c] sm:$0xf]
    %v43 = vld [vmem:[%s0 + $0x30] sm:$0xf]
    %v44 = vld [vmem:[%s0 + $0x34] sm:$0xf]
    %v45 = vld [vmem:[%s0 + $0x38] sm:$0xf]
    %v46 = vld [vmem:[%s0 + $0x3c] sm:$0xf]
    %v47 = vunpack.c.l.bf16 %v31
    %v48 = vunpack.c.l.bf16 %v32
    %v49 = vunpack.c.l.bf16 %v33
    %v50 = vunpack.c.l.bf16 %v34
    %v51 = vunpack.c.l.bf16 %v35
    %v52 = vunpack.c.l.bf16 %v36
    %v53 = vunpack.c.l.bf16 %v37
    %v54 = vunpack.c.l.bf16 %v38
    %v55 = vunpack.c.l.bf16 %v39
    %v56 = vunpack.c.l.bf16 %v40
    %v57 = vunpack.c.l.bf16 %v41
    %v58 = vunpack.c.l.bf16 %v42
    %v59 = vunpack.c.l.bf16 %v43
    %v60 = vunpack.c.l.bf16 %v44
    %v61 = vunpack.c.l.bf16 %v45
    %v62 = vunpack.c.l.bf16 %v46
    %63 = vadd.xlane.f32.xlu0 %v47
    %v64 = vpop.xlane.xlu0 %63
    %65 = vadd.xlane.f32.xlu0 %v48
    %v66 = vpop.xlane.xlu0 %65
    %67 = vadd.xlane.f32.xlu0 %v49
    %v68 = vpop.xlane.xlu0 %67
    %69 = vadd.xlane.f32.xlu0 %v50
    %v70 = vpop.xlane.xlu0 %69
    %71 = vadd.xlane.f32.xlu0 %v51
    %v72 = vpop.xlane.xlu0 %71
    %73 = vadd.xlane.f32.xlu0 %v52
    %v74 = vpop.xlane.xlu0 %73
    %75 = vadd.xlane.f32.xlu0 %v53
    %v76 = vpop.xlane.xlu0 %75
    %77 = vadd.xlane.f32.xlu0 %v54
    %v78 = vpop.xlane.xlu0 %77
    %79 = vadd.xlane.f32.xlu0 %v55
    %v80 = vpop.xlane.xlu0 %79
    %81 = vadd.xlane.f32.xlu0 %v56
    %v82 = vpop.xlane.xlu0 %81
    %83 = vadd.xlane.f32.xlu0 %v57
    %v84 = vpop.xlane.xlu0 %83
    %85 = vadd.xlane.f32.xlu0 %v58
    %v86 = vpop.xlane.xlu0 %85
    %87 = vadd.xlane.f32.xlu0 %v59
    %v88 = vpop.xlane.xlu0 %87
    %89 = vadd.xlane.f32.xlu0 %v60
    %v90 = vpop.xlane.xlu0 %89
    %91 = vadd.xlane.f32.xlu0 %v61
    %v92 = vpop.xlane.xlu0 %91
    %93 = vadd.xlane.f32.xlu0 %v62
    %v94 = vpop.xlane.xlu0 %93
    %v95 = vadd.f32 %v64, 1.0
    %v96 = vadd.f32 %v66, 1.0
    %v97 = vadd.f32 %v68, 1.0
    %v98 = vadd.f32 %v70, 1.0
    %v99 = vadd.f32 %v72, 1.0
    %v100 = vadd.f32 %v74, 1.0
    %v101 = vadd.f32 %v76, 1.0
    %v102 = vadd.f32 %v78, 1.0
    %v103 = vadd.f32 %v80, 1.0
    %v104 = vadd.f32 %v82, 1.0
    %v105 = vadd.f32 %v84, 1.0
    %v106 = vadd.f32 %v86, 1.0
    %v107 = vadd.f32 %v88, 1.0
    %v108 = vadd.f32 %v90, 1.0
    %v109 = vadd.f32 %v92, 1.0
    %v110 = vadd.f32 %v94, 1.0
    %v111 = vrsqrt.pop %v95
    %v112 = vrsqrt.pop %v96
    %v113 = vrsqrt.pop %v97
    %v114 = vrsqrt.pop %v98
    %v115 = vrsqrt.pop %v99
    %v116 = vrsqrt.pop %v100
    %v117 = vrsqrt.pop %v101
    %v118 = vrsqrt.pop %v102
    %v119 = vrsqrt.pop %v103
    %v120 = vrsqrt.pop %v104
    %v121 = vrsqrt.pop %v105
    %v122 = vrsqrt.pop %v106
    %v123 = vrsqrt.pop %v107
    %v124 = vrsqrt.pop %v108
    %v125 = vrsqrt.pop %v109
    %v126 = vrsqrt.pop %v110
    %v127 = vld [vmem:[%s1] sm:$0xff]
    %v128 = vld [vmem:[%s1 + $0x8] sm:$0xff]
    %v129 = vld [vmem:[%s1 + $0x10] sm:$0xff]
    %v130 = vld [vmem:[%s1 + $0x18] sm:$0xff]
    %v131 = vld [vmem:[%s1 + $0x20] sm:$0xff]
    %v132 = vld [vmem:[%s1 + $0x28] sm:$0xff]
    %v133 = vld [vmem:[%s1 + $0x30] sm:$0xff]
    %v134 = vld [vmem:[%s1 + $0x38] sm:$0xff]
    %v135 = vld [vmem:[%s1 + $0x40] sm:$0xff]
    %v136 = vld [vmem:[%s1 + $0x48] sm:$0xff]
    %v137 = vld [vmem:[%s1 + $0x50] sm:$0xff]
    %v138 = vld [vmem:[%s1 + $0x58] sm:$0xff]
    %v139 = vld [vmem:[%s1 + $0x60] sm:$0xff]
    %v140 = vld [vmem:[%s1 + $0x68] sm:$0xff]
    %v141 = vld [vmem:[%s1 + $0x70] sm:$0xff]
    %v142 = vld [vmem:[%s1 + $0x78] sm:$0xff]
    %v143 = vld [vmem:[%s3] sm:$0x3]
    %v144 = vmul.f32 %v127, %v111
    %v145 = vmul.f32 %v128, %v112
    %v146 = vmul.f32 %v129, %v113
    %v147 = vmul.f32 %v130, %v114
    %v148 = vmul.f32 %v131, %v115
    %v149 = vmul.f32 %v132, %v116
    %v150 = vmul.f32 %v133, %v117
    %v151 = vmul.f32 %v134, %v118
    %v152 = vmul.f32 %v135, %v119
    %v153 = vmul.f32 %v136, %v120
    %v154 = vmul.f32 %v137, %v121
    %v155 = vmul.f32 %v138, %v122
    %v156 = vmul.f32 %v139, %v123
    %v157 = vmul.f32 %v140, %v124
    %v158 = vmul.f32 %v141, %v125
    %v159 = vmul.f32 %v142, %v126
    %v160 = vpack.c.bf16 %v145, %v144
    %v161 = vpack.c.bf16 %v147, %v146
    %v162 = vpack.c.bf16 %v149, %v148
    %v163 = vpack.c.bf16 %v151, %v150
    %v164 = vpack.c.bf16 %v153, %v152
    %v165 = vpack.c.bf16 %v155, %v154
    %v166 = vpack.c.bf16 %v157, %v156
    %v167 = vpack.c.bf16 %v159, %v158
    %v184 = vunpack.c.l.b16 %v31
    %v185 = vunpack.c.l.b16 %v32
    %v186 = vunpack.c.l.b16 %v33
    %v187 = vunpack.c.l.b16 %v34
    %v188 = vunpack.c.l.b16 %v35
    %v189 = vunpack.c.l.b16 %v36
    %v190 = vunpack.c.l.b16 %v37
    %v191 = vunpack.c.l.b16 %v38
    %v192 = vunpack.c.l.b16 %v39
    %v193 = vunpack.c.l.b16 %v40
    %v194 = vunpack.c.l.b16 %v41
    %v195 = vunpack.c.l.b16 %v42
    %v196 = vunpack.c.l.b16 %v43
    %v197 = vunpack.c.l.b16 %v44
    %v198 = vunpack.c.l.b16 %v45
    %v199 = vunpack.c.l.b16 %v46
    %v200 = vpack.c.b16 %v185, %v184
    %v201 = vpack.c.b16 %v187, %v186
    %v202 = vpack.c.b16 %v189, %v188
    %v203 = vpack.c.b16 %v191, %v190
    %v204 = vpack.c.b16 %v193, %v192
    %v205 = vpack.c.b16 %v195, %v194
    %v206 = vpack.c.b16 %v197, %v196
    %v207 = vpack.c.b16 %v199, %v198
    %216 = vmatprep.subr.bf16.mxu0 0
    %217 = vmatpush1.bf16.msra.mxu0 %v160
    %218 = vmatprep.subr.bf16.mxu0 0
    %219 = vmatpush1.bf16.msra.mxu0 %v161
    %220 = vmatprep.subr.bf16.mxu0 0
    %221 = vmatpush1.bf16.msra.mxu0 %v162
    %222 = vmatprep.subr.bf16.mxu0 0
    %223 = vmatpush1.bf16.msra.mxu0 %v163
    %224 = vmatprep.subr.bf16.mxu0 0
    %225 = vmatpush1.bf16.msra.mxu0 %v164
    %226 = vmatprep.subr.bf16.mxu0 0
    %227 = vmatpush1.bf16.msra.mxu0 %v165
    %228 = vmatprep.subr.bf16.mxu0 0
    %229 = vmatpush1.bf16.msra.mxu0 %v166
    %230 = vmatprep.subr.bf16.mxu0 0
    %231 = vmatpush1.bf16.msra.mxu0 %v167
    %232 = vmatprep.subr.bf16.mxu0 0
    %233 = vmatpush1.bf16.msra.mxu0 0
    %234 = vmatprep.subr.bf16.mxu0 0
    %235 = vmatpush1.bf16.msra.mxu0 0
    %236 = vmatprep.subr.bf16.mxu0 0
    %237 = vmatpush1.bf16.msra.mxu0 0
    %238 = vmatprep.subr.bf16.mxu0 0
    %239 = vmatpush1.bf16.msra.mxu0 0
    %240 = vmatprep.subr.bf16.mxu0 0
    %241 = vmatpush1.bf16.msra.mxu0 0
    %242 = vmatprep.subr.bf16.mxu0 0
    %243 = vmatpush1.bf16.msra.mxu0 0
    %244 = vmatprep.subr.bf16.mxu0 0
    %245 = vmatpush1.bf16.msra.mxu0 0
    %246 = vmatprep.subr.bf16.mxu0 0
    %247 = vmatpush1.bf16.msra.mxu0 0
    %248 = vmatprep.mubr.bf16.mxu0 0
    %249 = vmatmul.mubr.bf16.gmra.mrb[0].mxu0 %v200
    %v250 = vpop.f32.mrb[0].mxu0
    %v251 = vadd.f32 %v144, %v250
    %v252 = vpop.f32.mrb[0].mxu0
    %v253 = vpop.f32.mrb[0].mxu0
    %v254 = vadd.f32 %v145, %v253
    %v255 = vpop.f32.mrb[0].mxu0
    %256 = vmatprep.mubr.bf16.mxu0 0
    %257 = vmatmul.mubr.bf16.gmra.mrb[0].mxu0 %v201
    %v258 = vpop.f32.mrb[0].mxu0
    %v259 = vadd.f32 %v146, %v258
    %v260 = vpop.f32.mrb[0].mxu0
    %v261 = vpop.f32.mrb[0].mxu0
    %v262 = vadd.f32 %v147, %v261
    %v263 = vpop.f32.mrb[0].mxu0
    %264 = vmatprep.mubr.bf16.mxu0 0
    %265 = vmatmul.mubr.bf16.gmra.mrb[0].mxu0 %v202
    %v266 = vpop.f32.mrb[0].mxu0
    %v267 = vadd.f32 %v148, %v266
    %v268 = vpop.f32.mrb[0].mxu0
    %v269 = vpop.f32.mrb[0].mxu0
    %v270 = vadd.f32 %v149, %v269
    %v271 = vpop.f32.mrb[0].mxu0
    %272 = vmatprep.mubr.bf16.mxu0 0
    %273 = vmatmul.mubr.bf16.gmra.mrb[0].mxu0 %v203
    %v274 = vpop.f32.mrb[0].mxu0
    %v275 = vadd.f32 %v150, %v274
    %v276 = vpop.f32.mrb[0].mxu0
    %v277 = vpop.f32.mrb[0].mxu0
    %v278 = vadd.f32 %v151, %v277
    %v279 = vpop.f32.mrb[0].mxu0
    %280 = vmatprep.mubr.bf16.mxu0 0
    %281 = vmatmul.mubr.bf16.gmra.mrb[0].mxu0 %v204
    %v282 = vpop.f32.mrb[0].mxu0
    %v283 = vadd.f32 %v152, %v282
    %v284 = vpop.f32.mrb[0].mxu0
    %v285 = vpop.f32.mrb[0].mxu0
    %v286 = vadd.f32 %v153, %v285
    %v287 = vpop.f32.mrb[0].mxu0
    %288 = vmatprep.mubr.bf16.mxu0 0
    %289 = vmatmul.mubr.bf16.gmra.mrb[0].mxu0 %v205
    %v290 = vpop.f32.mrb[0].mxu0
    %v291 = vadd.f32 %v154, %v290
    %v292 = vpop.f32.mrb[0].mxu0
    %v293 = vpop.f32.mrb[0].mxu0
    %v294 = vadd.f32 %v155, %v293
    %v295 = vpop.f32.mrb[0].mxu0
    %296 = vmatprep.mubr.bf16.mxu0 0
    %297 = vmatmul.mubr.bf16.gmra.mrb[0].mxu0 %v206
    %v298 = vpop.f32.mrb[0].mxu0
    %v299 = vadd.f32 %v156, %v298
    %v300 = vpop.f32.mrb[0].mxu0
    %v301 = vpop.f32.mrb[0].mxu0
    %v302 = vadd.f32 %v157, %v301
    %v303 = vpop.f32.mrb[0].mxu0
    %304 = vmatprep.mubr.bf16.mxu0 0
    %305 = vmatmul.mubr.bf16.gmra.mrb[0].mxu0 %v207
    %v306 = vpop.f32.mrb[0].mxu0
    %v307 = vadd.f32 %v158, %v306
    %v308 = vpop.f32.mrb[0].mxu0
    %v309 = vpop.f32.mrb[0].mxu0
    %v310 = vadd.f32 %v159, %v309
    %v311 = vpop.f32.mrb[0].mxu0
    %312 = vdwg.mxu0
    %v313 = vmul.f32 %v251, %v111
    %v314 = vmul.f32 %v254, %v112
    %v315 = vmul.f32 %v259, %v113
    %v316 = vmul.f32 %v262, %v114
    %v317 = vmul.f32 %v267, %v115
    %v318 = vmul.f32 %v270, %v116
    %v319 = vmul.f32 %v275, %v117
    %v320 = vmul.f32 %v278, %v118
    %v321 = vmul.f32 %v283, %v119
    %v322 = vmul.f32 %v286, %v120
    %v323 = vmul.f32 %v291, %v121
    %v324 = vmul.f32 %v294, %v122
    %v325 = vmul.f32 %v299, %v123
    %v326 = vmul.f32 %v302, %v124
    %v327 = vmul.f32 %v307, %v125
    %v328 = vmul.f32 %v310, %v126
    %v329 = vpack.c.bf16 %v314, %v313
    %v330 = vpack.c.bf16 %v316, %v315
    %v331 = vpack.c.bf16 %v318, %v317
    %v332 = vpack.c.bf16 %v320, %v319
    %v333 = vpack.c.bf16 %v322, %v321
    %v334 = vpack.c.bf16 %v324, %v323
    %v335 = vpack.c.bf16 %v326, %v325
    %v336 = vpack.c.bf16 %v328, %v327
    %v337 = vld [vmem:[%s2] sm:$0xf]
    %v338 = vld [vmem:[%s2 + $0x4] sm:$0xf]
    %v341 = vunpack.c.l.b16 %v337
    %v342 = vunpack.c.l.b16 %v338
    %v343 = vpack.c.b16 %v342, %v341
    %vm345 = vcmask 130048
    %v347 = vsel %vm345, %v329, 0
    %v350 = vsel %vm345, %v330, 0
    %v353 = vsel %vm345, %v331, 0
    %v356 = vsel %vm345, %v332, 0
    %v359 = vsel %vm345, %v333, 0
    %v362 = vsel %vm345, %v334, 0
    %v365 = vsel %vm345, %v335, 0
    %v368 = vsel %vm345, %v336, 0
    %370 = vmatprep.subr.bf16.mxu0 0
    %371 = vmatpush1.bf16.msra.mxu0 %v343
    %372 = vmatprep.subr.bf16.mxu0 0
    %373 = vmatpush1.bf16.msra.mxu0 0
    %374 = vmatprep.subr.bf16.mxu0 0
    %375 = vmatpush1.bf16.msra.mxu0 0
    %376 = vmatprep.subr.bf16.mxu0 0
    %377 = vmatpush1.bf16.msra.mxu0 0
    %378 = vmatprep.subr.bf16.mxu0 0
    %379 = vmatpush1.bf16.msra.mxu0 0
    %380 = vmatprep.subr.bf16.mxu0 0
    %381 = vmatpush1.bf16.msra.mxu0 0
    %382 = vmatprep.subr.bf16.mxu0 0
    %383 = vmatpush1.bf16.msra.mxu0 0
    %384 = vmatprep.subr.bf16.mxu0 0
    %385 = vmatpush1.bf16.msra.mxu0 0
    %386 = vmatprep.subr.bf16.mxu0 0
    %387 = vmatpush1.bf16.msra.mxu0 0
    %388 = vmatprep.subr.bf16.mxu0 0
    %389 = vmatpush1.bf16.msra.mxu0 0
    %390 = vmatprep.subr.bf16.mxu0 0
    %391 = vmatpush1.bf16.msra.mxu0 0
    %392 = vmatprep.subr.bf16.mxu0 0
    %393 = vmatpush1.bf16.msra.mxu0 0
    %394 = vmatprep.subr.bf16.mxu0 0
    %395 = vmatpush1.bf16.msra.mxu0 0
    %396 = vmatprep.subr.bf16.mxu0 0
    %397 = vmatpush1.bf16.msra.mxu0 0
    %398 = vmatprep.subr.bf16.mxu0 0
    %399 = vmatpush1.bf16.msra.mxu0 0
    %400 = vmatprep.subr.bf16.mxu0 0
    %401 = vmatpush1.bf16.msra.mxu0 0
    %402 = vmatprep.mubr.bf16.mxu0 0
    %403 = vmatmul.mubr.bf16.gmra.mrb[0].mxu0 %v347
    %v404 = vpop.f32.mrb[0].mxu0
    %v405 = vadd.f32 0.0, %v404
    %v406 = vpop.f32.mrb[0].mxu0
    %v407 = vpop.f32.mrb[0].mxu0
    %v408 = vadd.f32 0.0, %v407
    %v409 = vpop.f32.mrb[0].mxu0
    %410 = vmatprep.mubr.bf16.mxu0 0
    %411 = vmatmul.mubr.bf16.gmra.mrb[0].mxu0 %v350
    %v412 = vpop.f32.mrb[0].mxu0
    %v413 = vadd.f32 0.0, %v412
    %v414 = vpop.f32.mrb[0].mxu0
    %v415 = vpop.f32.mrb[0].mxu0
    %v416 = vadd.f32 0.0, %v415
    %v417 = vpop.f32.mrb[0].mxu0
    %418 = vmatprep.mubr.bf16.mxu0 0
    %419 = vmatmul.mubr.bf16.gmra.mrb[0].mxu0 %v353
    %v420 = vpop.f32.mrb[0].mxu0
    %v421 = vadd.f32 0.0, %v420
    %v422 = vpop.f32.mrb[0].mxu0
    %v423 = vpop.f32.mrb[0].mxu0
    %v424 = vadd.f32 0.0, %v423
    %v425 = vpop.f32.mrb[0].mxu0
    %426 = vmatprep.mubr.bf16.mxu0 0
    %427 = vmatmul.mubr.bf16.gmra.mrb[0].mxu0 %v356
    %v428 = vpop.f32.mrb[0].mxu0
    %v429 = vadd.f32 0.0, %v428
    %v430 = vpop.f32.mrb[0].mxu0
    %v431 = vpop.f32.mrb[0].mxu0
    %v432 = vadd.f32 0.0, %v431
    %v433 = vpop.f32.mrb[0].mxu0
    %434 = vmatprep.mubr.bf16.mxu0 0
    %435 = vmatmul.mubr.bf16.gmra.mrb[0].mxu0 %v359
    %v436 = vpop.f32.mrb[0].mxu0
    %v437 = vadd.f32 0.0, %v436
    %v438 = vpop.f32.mrb[0].mxu0
    %v439 = vpop.f32.mrb[0].mxu0
    %v440 = vadd.f32 0.0, %v439
    %v441 = vpop.f32.mrb[0].mxu0
    %442 = vmatprep.mubr.bf16.mxu0 0
    %443 = vmatmul.mubr.bf16.gmra.mrb[0].mxu0 %v362
    %v444 = vpop.f32.mrb[0].mxu0
    %v445 = vadd.f32 0.0, %v444
    %v446 = vpop.f32.mrb[0].mxu0
    %v447 = vpop.f32.mrb[0].mxu0
    %v448 = vadd.f32 0.0, %v447
    %v449 = vpop.f32.mrb[0].mxu0
    %450 = vmatprep.mubr.bf16.mxu0 0
    %451 = vmatmul.mubr.bf16.gmra.mrb[0].mxu0 %v365
    %v452 = vpop.f32.mrb[0].mxu0
    %v453 = vadd.f32 0.0, %v452
    %v454 = vpop.f32.mrb[0].mxu0
    %v455 = vpop.f32.mrb[0].mxu0
    %v456 = vadd.f32 0.0, %v455
    %v457 = vpop.f32.mrb[0].mxu0
    %458 = vmatprep.mubr.bf16.mxu0 0
    %459 = vmatmul.mubr.bf16.gmra.mrb[0].mxu0 %v368
    %v460 = vpop.f32.mrb[0].mxu0
    %v461 = vadd.f32 0.0, %v460
    %v462 = vpop.f32.mrb[0].mxu0
    %v463 = vpop.f32.mrb[0].mxu0
    %v464 = vadd.f32 0.0, %v463
    %v465 = vpop.f32.mrb[0].mxu0
    %466 = vdwg.mxu0
    %v467 = vlaneseq
    %v468 = vshrl.u32 %v467, 7
    %v469 = vsub.s32 0, %v468
    %v470 = vrot.slane %v143, %v469
    %v471 = vmul.f32 %v405, %v470
    %v472 = vmul.f32 %v408, %v470
    %v473 = vmul.f32 %v413, %v470
    %v474 = vmul.f32 %v416, %v470
    %v475 = vmul.f32 %v421, %v470
    %v476 = vmul.f32 %v424, %v470
    %v477 = vmul.f32 %v429, %v470
    %v478 = vmul.f32 %v432, %v470
    %v479 = vmul.f32 %v437, %v470
    %v480 = vmul.f32 %v440, %v470
    %v481 = vmul.f32 %v445, %v470
    %v482 = vmul.f32 %v448, %v470
    %v483 = vmul.f32 %v453, %v470
    %v484 = vmul.f32 %v456, %v470
    %v485 = vmul.f32 %v461, %v470
    %v486 = vmul.f32 %v464, %v470
    %v487 = vlaneseq
    %v488 = vshrl.u32 %v487, 7
    %v489 = vsub.s32 1, %v488
    %v490 = vrot.slane %v143, %v489
    %v491 = vadd.f32 %v471, %v490
    %v492 = vadd.f32 %v472, %v490
    %v493 = vadd.f32 %v473, %v490
    %v494 = vadd.f32 %v474, %v490
    %v495 = vadd.f32 %v475, %v490
    %v496 = vadd.f32 %v476, %v490
    %v497 = vadd.f32 %v477, %v490
    %v498 = vadd.f32 %v478, %v490
    %v499 = vadd.f32 %v479, %v490
    %v500 = vadd.f32 %v480, %v490
    %v501 = vadd.f32 %v481, %v490
    %v502 = vadd.f32 %v482, %v490
    %v503 = vadd.f32 %v483, %v490
    %v504 = vadd.f32 %v484, %v490
    %v505 = vadd.f32 %v485, %v490
    %v506 = vadd.f32 %v486, %v490
    %v507 = vmax.f32 %v491, 0.0
    %v508 = vmax.f32 %v492, 0.0
    %v509 = vmax.f32 %v493, 0.0
    %v510 = vmax.f32 %v494, 0.0
    %v511 = vmax.f32 %v495, 0.0
    %v512 = vmax.f32 %v496, 0.0
    %v513 = vmax.f32 %v497, 0.0
    %v514 = vmax.f32 %v498, 0.0
    %v515 = vmax.f32 %v499, 0.0
    %v516 = vmax.f32 %v500, 0.0
    %v517 = vmax.f32 %v501, 0.0
    %v518 = vmax.f32 %v502, 0.0
    %v519 = vmax.f32 %v503, 0.0
    %v520 = vmax.f32 %v504, 0.0
    %v521 = vmax.f32 %v505, 0.0
    %v522 = vmax.f32 %v506, 0.0
    %v523 = vld [vmem:[%s5] sm:$0x3]
    %v524 = vpack.c.bf16 %v508, %v507
    %v525 = vpack.c.bf16 %v510, %v509
    %v526 = vpack.c.bf16 %v512, %v511
    %v527 = vpack.c.bf16 %v514, %v513
    %v528 = vpack.c.bf16 %v516, %v515
    %v529 = vpack.c.bf16 %v518, %v517
    %v530 = vpack.c.bf16 %v520, %v519
    %v531 = vpack.c.bf16 %v522, %v521
    %v532 = vld [vmem:[%s4] sm:$0xf]
    %v533 = vld [vmem:[%s4 + $0x4] sm:$0xf]
    %v534 = vld [vmem:[%s4 + $0x8] sm:$0xf]
    %v535 = vld [vmem:[%s4 + $0xc] sm:$0xf]
    %v540 = vunpack.c.l.b16 %v532
    %v541 = vunpack.c.l.b16 %v533
    %v542 = vunpack.c.l.b16 %v534
    %v543 = vunpack.c.l.b16 %v535
    %v544 = vpack.c.b16 %v541, %v540
    %v545 = vpack.c.b16 %v543, %v542
    %vm548 = vcmask 261120
    %v550 = vsel %vm548, %v524, 0
    %v553 = vsel %vm548, %v525, 0
    %v556 = vsel %vm548, %v526, 0
    %v559 = vsel %vm548, %v527, 0
    %v562 = vsel %vm548, %v528, 0
    %v565 = vsel %vm548, %v529, 0
    %v568 = vsel %vm548, %v530, 0
    %v571 = vsel %vm548, %v531, 0
    %573 = vmatprep.subr.bf16.mxu0 0
    %574 = vmatpush1.bf16.msra.mxu0 %v544
    %575 = vmatprep.subr.bf16.mxu0 0
    %576 = vmatpush1.bf16.msra.mxu0 %v545
    %577 = vmatprep.subr.bf16.mxu0 0
    %578 = vmatpush1.bf16.msra.mxu0 0
    %579 = vmatprep.subr.bf16.mxu0 0
    %580 = vmatpush1.bf16.msra.mxu0 0
    %581 = vmatprep.subr.bf16.mxu0 0
    %582 = vmatpush1.bf16.msra.mxu0 0
    %583 = vmatprep.subr.bf16.mxu0 0
    %584 = vmatpush1.bf16.msra.mxu0 0
    %585 = vmatprep.subr.bf16.mxu0 0
    %586 = vmatpush1.bf16.msra.mxu0 0
    %587 = vmatprep.subr.bf16.mxu0 0
    %588 = vmatpush1.bf16.msra.mxu0 0
    %589 = vmatprep.subr.bf16.mxu0 0
    %590 = vmatpush1.bf16.msra.mxu0 0
    %591 = vmatprep.subr.bf16.mxu0 0
    %592 = vmatpush1.bf16.msra.mxu0 0
    %593 = vmatprep.subr.bf16.mxu0 0
    %594 = vmatpush1.bf16.msra.mxu0 0
    %595 = vmatprep.subr.bf16.mxu0 0
    %596 = vmatpush1.bf16.msra.mxu0 0
    %597 = vmatprep.subr.bf16.mxu0 0
    %598 = vmatpush1.bf16.msra.mxu0 0
    %599 = vmatprep.subr.bf16.mxu0 0
    %600 = vmatpush1.bf16.msra.mxu0 0
    %601 = vmatprep.subr.bf16.mxu0 0
    %602 = vmatpush1.bf16.msra.mxu0 0
    %603 = vmatprep.subr.bf16.mxu0 0
    %604 = vmatpush1.bf16.msra.mxu0 0
    %605 = vmatprep.mubr.bf16.mxu0 0
    %606 = vmatmul.mubr.bf16.gmra.mrb[0].mxu0 %v550
    %v607 = vpop.f32.mrb[0].mxu0
    %v608 = vadd.f32 0.0, %v607
    %v609 = vpop.f32.mrb[0].mxu0
    %v610 = vpop.f32.mrb[0].mxu0
    %v611 = vadd.f32 0.0, %v610
    %v612 = vpop.f32.mrb[0].mxu0
    %613 = vmatprep.mubr.bf16.mxu0 0
    %614 = vmatmul.mubr.bf16.gmra.mrb[0].mxu0 %v553
    %v615 = vpop.f32.mrb[0].mxu0
    %v616 = vadd.f32 0.0, %v615
    %v617 = vpop.f32.mrb[0].mxu0
    %v618 = vpop.f32.mrb[0].mxu0
    %v619 = vadd.f32 0.0, %v618
    %v620 = vpop.f32.mrb[0].mxu0
    %621 = vmatprep.mubr.bf16.mxu0 0
    %622 = vmatmul.mubr.bf16.gmra.mrb[0].mxu0 %v556
    %v623 = vpop.f32.mrb[0].mxu0
    %v624 = vadd.f32 0.0, %v623
    %v625 = vpop.f32.mrb[0].mxu0
    %v626 = vpop.f32.mrb[0].mxu0
    %v627 = vadd.f32 0.0, %v626
    %v628 = vpop.f32.mrb[0].mxu0
    %629 = vmatprep.mubr.bf16.mxu0 0
    %630 = vmatmul.mubr.bf16.gmra.mrb[0].mxu0 %v559
    %v631 = vpop.f32.mrb[0].mxu0
    %v632 = vadd.f32 0.0, %v631
    %v633 = vpop.f32.mrb[0].mxu0
    %v634 = vpop.f32.mrb[0].mxu0
    %v635 = vadd.f32 0.0, %v634
    %v636 = vpop.f32.mrb[0].mxu0
    %637 = vmatprep.mubr.bf16.mxu0 0
    %638 = vmatmul.mubr.bf16.gmra.mrb[0].mxu0 %v562
    %v639 = vpop.f32.mrb[0].mxu0
    %v640 = vadd.f32 0.0, %v639
    %v641 = vpop.f32.mrb[0].mxu0
    %v642 = vpop.f32.mrb[0].mxu0
    %v643 = vadd.f32 0.0, %v642
    %v644 = vpop.f32.mrb[0].mxu0
    %645 = vmatprep.mubr.bf16.mxu0 0
    %646 = vmatmul.mubr.bf16.gmra.mrb[0].mxu0 %v565
    %v647 = vpop.f32.mrb[0].mxu0
    %v648 = vadd.f32 0.0, %v647
    %v649 = vpop.f32.mrb[0].mxu0
    %v650 = vpop.f32.mrb[0].mxu0
    %v651 = vadd.f32 0.0, %v650
    %v652 = vpop.f32.mrb[0].mxu0
    %653 = vmatprep.mubr.bf16.mxu0 0
    %654 = vmatmul.mubr.bf16.gmra.mrb[0].mxu0 %v568
    %v655 = vpop.f32.mrb[0].mxu0
    %v656 = vadd.f32 0.0, %v655
    %v657 = vpop.f32.mrb[0].mxu0
    %v658 = vpop.f32.mrb[0].mxu0
    %v659 = vadd.f32 0.0, %v658
    %v660 = vpop.f32.mrb[0].mxu0
    %661 = vmatprep.mubr.bf16.mxu0 0
    %662 = vmatmul.mubr.bf16.gmra.mrb[0].mxu0 %v571
    %v663 = vpop.f32.mrb[0].mxu0
    %v664 = vadd.f32 0.0, %v663
    %v665 = vpop.f32.mrb[0].mxu0
    %v666 = vpop.f32.mrb[0].mxu0
    %v667 = vadd.f32 0.0, %v666
    %v668 = vpop.f32.mrb[0].mxu0
    %669 = vdwg.mxu0
    %v670 = vmul.f32 %v608, %v111
    %v671 = vmul.f32 %v611, %v112
    %v672 = vmul.f32 %v616, %v113
    %v673 = vmul.f32 %v619, %v114
    %v674 = vmul.f32 %v624, %v115
    %v675 = vmul.f32 %v627, %v116
    %v676 = vmul.f32 %v632, %v117
    %v677 = vmul.f32 %v635, %v118
    %v678 = vmul.f32 %v640, %v119
    %v679 = vmul.f32 %v643, %v120
    %v680 = vmul.f32 %v648, %v121
    %v681 = vmul.f32 %v651, %v122
    %v682 = vmul.f32 %v656, %v123
    %v683 = vmul.f32 %v659, %v124
    %v684 = vmul.f32 %v664, %v125
    %v685 = vmul.f32 %v667, %v126
    %v686 = vpack.c.bf16 %v671, %v670
    %v687 = vpack.c.bf16 %v673, %v672
    %v688 = vpack.c.bf16 %v675, %v674
    %v689 = vpack.c.bf16 %v677, %v676
    %v690 = vpack.c.bf16 %v679, %v678
    %v691 = vpack.c.bf16 %v681, %v680
    %v692 = vpack.c.bf16 %v683, %v682
    %v693 = vpack.c.bf16 %v685, %v684
    %694 = vmatprep.subr.bf16.mxu0 0
    %695 = vmatpush1.bf16.msra.mxu0 %v686
    %696 = vmatprep.subr.bf16.mxu0 0
    %697 = vmatpush1.bf16.msra.mxu0 %v687
    %698 = vmatprep.subr.bf16.mxu0 0
    %699 = vmatpush1.bf16.msra.mxu0 %v688
    %700 = vmatprep.subr.bf16.mxu0 0
    %701 = vmatpush1.bf16.msra.mxu0 %v689
    %702 = vmatprep.subr.bf16.mxu0 0
    %703 = vmatpush1.bf16.msra.mxu0 %v690
    %704 = vmatprep.subr.bf16.mxu0 0
    %705 = vmatpush1.bf16.msra.mxu0 %v691
    %706 = vmatprep.subr.bf16.mxu0 0
    %707 = vmatpush1.bf16.msra.mxu0 %v692
    %708 = vmatprep.subr.bf16.mxu0 0
    %709 = vmatpush1.bf16.msra.mxu0 %v693
    %710 = vmatprep.subr.bf16.mxu0 0
    %711 = vmatpush1.bf16.msra.mxu0 0
    %712 = vmatprep.subr.bf16.mxu0 0
    %713 = vmatpush1.bf16.msra.mxu0 0
    %714 = vmatprep.subr.bf16.mxu0 0
    %715 = vmatpush1.bf16.msra.mxu0 0
    %716 = vmatprep.subr.bf16.mxu0 0
    %717 = vmatpush1.bf16.msra.mxu0 0
    %718 = vmatprep.subr.bf16.mxu0 0
    %719 = vmatpush1.bf16.msra.mxu0 0
    %720 = vmatprep.subr.bf16.mxu0 0
    %721 = vmatpush1.bf16.msra.mxu0 0
    %722 = vmatprep.subr.bf16.mxu0 0
    %723 = vmatpush1.bf16.msra.mxu0 0
    %724 = vmatprep.subr.bf16.mxu0 0
    %725 = vmatpush1.bf16.msra.mxu0 0
    %726 = vmatprep.mubr.bf16.mxu0 0
    %727 = vmatmul.mubr.bf16.gmra.mrb[0].mxu0 %v200
    %v728 = vpop.f32.mrb[0].mxu0
    %v729 = vadd.f32 %v670, %v728
    %v730 = vpop.f32.mrb[0].mxu0
    %v731 = vpop.f32.mrb[0].mxu0
    %v732 = vadd.f32 %v671, %v731
    %v733 = vpop.f32.mrb[0].mxu0
    %734 = vmatprep.mubr.bf16.mxu0 0
    %735 = vmatmul.mubr.bf16.gmra.mrb[0].mxu0 %v201
    %v736 = vpop.f32.mrb[0].mxu0
    %v737 = vadd.f32 %v672, %v736
    %v738 = vpop.f32.mrb[0].mxu0
    %v739 = vpop.f32.mrb[0].mxu0
    %v740 = vadd.f32 %v673, %v739
    %v741 = vpop.f32.mrb[0].mxu0
    %742 = vmatprep.mubr.bf16.mxu0 0
    %743 = vmatmul.mubr.bf16.gmra.mrb[0].mxu0 %v202
    %v744 = vpop.f32.mrb[0].mxu0
    %v745 = vadd.f32 %v674, %v744
    %v746 = vpop.f32.mrb[0].mxu0
    %v747 = vpop.f32.mrb[0].mxu0
    %v748 = vadd.f32 %v675, %v747
    %v749 = vpop.f32.mrb[0].mxu0
    %750 = vmatprep.mubr.bf16.mxu0 0
    %751 = vmatmul.mubr.bf16.gmra.mrb[0].mxu0 %v203
    %v752 = vpop.f32.mrb[0].mxu0
    %v753 = vadd.f32 %v676, %v752
    %v754 = vpop.f32.mrb[0].mxu0
    %v755 = vpop.f32.mrb[0].mxu0
    %v756 = vadd.f32 %v677, %v755
    %v757 = vpop.f32.mrb[0].mxu0
    %758 = vmatprep.mubr.bf16.mxu0 0
    %759 = vmatmul.mubr.bf16.gmra.mrb[0].mxu0 %v204
    %v760 = vpop.f32.mrb[0].mxu0
    %v761 = vadd.f32 %v678, %v760
    %v762 = vpop.f32.mrb[0].mxu0
    %v763 = vpop.f32.mrb[0].mxu0
    %v764 = vadd.f32 %v679, %v763
    %v765 = vpop.f32.mrb[0].mxu0
    %766 = vmatprep.mubr.bf16.mxu0 0
    %767 = vmatmul.mubr.bf16.gmra.mrb[0].mxu0 %v205
    %v768 = vpop.f32.mrb[0].mxu0
    %v769 = vadd.f32 %v680, %v768
    %v770 = vpop.f32.mrb[0].mxu0
    %v771 = vpop.f32.mrb[0].mxu0
    %v772 = vadd.f32 %v681, %v771
    %v773 = vpop.f32.mrb[0].mxu0
    %774 = vmatprep.mubr.bf16.mxu0 0
    %775 = vmatmul.mubr.bf16.gmra.mrb[0].mxu0 %v206
    %v776 = vpop.f32.mrb[0].mxu0
    %v777 = vadd.f32 %v682, %v776
    %v778 = vpop.f32.mrb[0].mxu0
    %v779 = vpop.f32.mrb[0].mxu0
    %v780 = vadd.f32 %v683, %v779
    %v781 = vpop.f32.mrb[0].mxu0
    %782 = vmatprep.mubr.bf16.mxu0 0
    %783 = vmatmul.mubr.bf16.gmra.mrb[0].mxu0 %v207
    %v784 = vpop.f32.mrb[0].mxu0
    %v785 = vadd.f32 %v684, %v784
    %v786 = vpop.f32.mrb[0].mxu0
    %v787 = vpop.f32.mrb[0].mxu0
    %v788 = vadd.f32 %v685, %v787
    %v789 = vpop.f32.mrb[0].mxu0
    %790 = vdwg.mxu0
    %v791 = vmul.f32 %v729, %v111
    %v792 = vmul.f32 %v732, %v112
    %v793 = vmul.f32 %v737, %v113
    %v794 = vmul.f32 %v740, %v114
    %v795 = vmul.f32 %v745, %v115
    %v796 = vmul.f32 %v748, %v116
    %v797 = vmul.f32 %v753, %v117
    %v798 = vmul.f32 %v756, %v118
    %v799 = vmul.f32 %v761, %v119
    %v800 = vmul.f32 %v764, %v120
    %v801 = vmul.f32 %v769, %v121
    %v802 = vmul.f32 %v772, %v122
    %v803 = vmul.f32 %v777, %v123
    %v804 = vmul.f32 %v780, %v124
    %v805 = vmul.f32 %v785, %v125
    %v806 = vmul.f32 %v788, %v126
    %v807 = vlaneseq
    %v808 = vshrl.u32 %v807, 7
    %v809 = vsub.s32 0, %v808
    %v810 = vrot.slane %v523, %v809
    %v811 = vmul.f32 %v791, %v810
    %v812 = vmul.f32 %v792, %v810
    %v813 = vmul.f32 %v793, %v810
    %v814 = vmul.f32 %v794, %v810
    %v815 = vmul.f32 %v795, %v810
    %v816 = vmul.f32 %v796, %v810
    %v817 = vmul.f32 %v797, %v810
    %v818 = vmul.f32 %v798, %v810
    %v819 = vmul.f32 %v799, %v810
    %v820 = vmul.f32 %v800, %v810
    %v821 = vmul.f32 %v801, %v810
    %v822 = vmul.f32 %v802, %v810
    %v823 = vmul.f32 %v803, %v810
    %v824 = vmul.f32 %v804, %v810
    %v825 = vmul.f32 %v805, %v810
    %v826 = vmul.f32 %v806, %v810
    %v827 = vlaneseq
    %v828 = vshrl.u32 %v827, 7
    %v829 = vsub.s32 1, %v828
    %v830 = vrot.slane %v523, %v829
    %v831 = vadd.f32 %v811, %v830
    %v832 = vadd.f32 %v812, %v830
    %v833 = vadd.f32 %v813, %v830
    %v834 = vadd.f32 %v814, %v830
    %v835 = vadd.f32 %v815, %v830
    %v836 = vadd.f32 %v816, %v830
    %v837 = vadd.f32 %v817, %v830
    %v838 = vadd.f32 %v818, %v830
    %v839 = vadd.f32 %v819, %v830
    %v840 = vadd.f32 %v820, %v830
    %v841 = vadd.f32 %v821, %v830
    %v842 = vadd.f32 %v822, %v830
    %v843 = vadd.f32 %v823, %v830
    %v844 = vadd.f32 %v824, %v830
    %v845 = vadd.f32 %v825, %v830
    %v846 = vadd.f32 %v826, %v830
    %v847 = vmax.f32 %v831, 0.0
    %v848 = vmax.f32 %v832, 0.0
    %v849 = vmax.f32 %v833, 0.0
    %v850 = vmax.f32 %v834, 0.0
    %v851 = vmax.f32 %v835, 0.0
    %v852 = vmax.f32 %v836, 0.0
    %v853 = vmax.f32 %v837, 0.0
    %v854 = vmax.f32 %v838, 0.0
    %v855 = vmax.f32 %v839, 0.0
    %v856 = vmax.f32 %v840, 0.0
    %v857 = vmax.f32 %v841, 0.0
    %v858 = vmax.f32 %v842, 0.0
    %v859 = vmax.f32 %v843, 0.0
    %v860 = vmax.f32 %v844, 0.0
    %v861 = vmax.f32 %v845, 0.0
    %v862 = vmax.f32 %v846, 0.0
    %v863 = vld [vmem:[%s7] sm:$0x3]
    %v864 = vpack.c.bf16 %v848, %v847
    %v865 = vpack.c.bf16 %v850, %v849
    %v866 = vpack.c.bf16 %v852, %v851
    %v867 = vpack.c.bf16 %v854, %v853
    %v868 = vpack.c.bf16 %v856, %v855
    %v869 = vpack.c.bf16 %v858, %v857
    %v870 = vpack.c.bf16 %v860, %v859
    %v871 = vpack.c.bf16 %v862, %v861
    %v872 = vld [vmem:[%s6] sm:$0xf]
    %v873 = vld [vmem:[%s6 + $0x4] sm:$0xf]
    %v874 = vld [vmem:[%s6 + $0x8] sm:$0xf]
    %v875 = vld [vmem:[%s6 + $0xc] sm:$0xf]
    %v880 = vunpack.c.l.b16 %v872
    %v881 = vunpack.c.l.b16 %v873
    %v882 = vunpack.c.l.b16 %v874
    %v883 = vunpack.c.l.b16 %v875
    %v884 = vpack.c.b16 %v881, %v880
    %v885 = vpack.c.b16 %v883, %v882
    %v889 = vsel %vm548, %v864, 0
    %v892 = vsel %vm548, %v865, 0
    %v895 = vsel %vm548, %v866, 0
    %v898 = vsel %vm548, %v867, 0
    %v901 = vsel %vm548, %v868, 0
    %v904 = vsel %vm548, %v869, 0
    %v907 = vsel %vm548, %v870, 0
    %v910 = vsel %vm548, %v871, 0
    %912 = vmatprep.subr.bf16.mxu0 0
    %913 = vmatpush1.bf16.msra.mxu0 %v884
    %914 = vmatprep.subr.bf16.mxu0 0
    %915 = vmatpush1.bf16.msra.mxu0 %v885
    %916 = vmatprep.subr.bf16.mxu0 0
    %917 = vmatpush1.bf16.msra.mxu0 0
    %918 = vmatprep.subr.bf16.mxu0 0
    %919 = vmatpush1.bf16.msra.mxu0 0
    %920 = vmatprep.subr.bf16.mxu0 0
    %921 = vmatpush1.bf16.msra.mxu0 0
    %922 = vmatprep.subr.bf16.mxu0 0
    %923 = vmatpush1.bf16.msra.mxu0 0
    %924 = vmatprep.subr.bf16.mxu0 0
    %925 = vmatpush1.bf16.msra.mxu0 0
    %926 = vmatprep.subr.bf16.mxu0 0
    %927 = vmatpush1.bf16.msra.mxu0 0
    %928 = vmatprep.subr.bf16.mxu0 0
    %929 = vmatpush1.bf16.msra.mxu0 0
    %930 = vmatprep.subr.bf16.mxu0 0
    %931 = vmatpush1.bf16.msra.mxu0 0
    %932 = vmatprep.subr.bf16.mxu0 0
    %933 = vmatpush1.bf16.msra.mxu0 0
    %934 = vmatprep.subr.bf16.mxu0 0
    %935 = vmatpush1.bf16.msra.mxu0 0
    %936 = vmatprep.subr.bf16.mxu0 0
    %937 = vmatpush1.bf16.msra.mxu0 0
    %938 = vmatprep.subr.bf16.mxu0 0
    %939 = vmatpush1.bf16.msra.mxu0 0
    %940 = vmatprep.subr.bf16.mxu0 0
    %941 = vmatpush1.bf16.msra.mxu0 0
    %942 = vmatprep.subr.bf16.mxu0 0
    %943 = vmatpush1.bf16.msra.mxu0 0
    %944 = vmatprep.mubr.bf16.mxu0 0
    %945 = vmatmul.mubr.bf16.gmra.mrb[0].mxu0 %v889
    %v946 = vpop.f32.mrb[0].mxu0
    %v947 = vadd.f32 0.0, %v946
    %v948 = vpop.f32.mrb[0].mxu0
    %v949 = vpop.f32.mrb[0].mxu0
    %v950 = vadd.f32 0.0, %v949
    %v951 = vpop.f32.mrb[0].mxu0
    %952 = vmatprep.mubr.bf16.mxu0 0
    %953 = vmatmul.mubr.bf16.gmra.mrb[0].mxu0 %v892
    %v954 = vpop.f32.mrb[0].mxu0
    %v955 = vadd.f32 0.0, %v954
    %v956 = vpop.f32.mrb[0].mxu0
    %v957 = vpop.f32.mrb[0].mxu0
    %v958 = vadd.f32 0.0, %v957
    %v959 = vpop.f32.mrb[0].mxu0
    %960 = vmatprep.mubr.bf16.mxu0 0
    %961 = vmatmul.mubr.bf16.gmra.mrb[0].mxu0 %v895
    %v962 = vpop.f32.mrb[0].mxu0
    %v963 = vadd.f32 0.0, %v962
    %v964 = vpop.f32.mrb[0].mxu0
    %v965 = vpop.f32.mrb[0].mxu0
    %v966 = vadd.f32 0.0, %v965
    %v967 = vpop.f32.mrb[0].mxu0
    %968 = vmatprep.mubr.bf16.mxu0 0
    %969 = vmatmul.mubr.bf16.gmra.mrb[0].mxu0 %v898
    %v970 = vpop.f32.mrb[0].mxu0
    %v971 = vadd.f32 0.0, %v970
    %v972 = vpop.f32.mrb[0].mxu0
    %v973 = vpop.f32.mrb[0].mxu0
    %v974 = vadd.f32 0.0, %v973
    %v975 = vpop.f32.mrb[0].mxu0
    %976 = vmatprep.mubr.bf16.mxu0 0
    %977 = vmatmul.mubr.bf16.gmra.mrb[0].mxu0 %v901
    %v978 = vpop.f32.mrb[0].mxu0
    %v979 = vadd.f32 0.0, %v978
    %v980 = vpop.f32.mrb[0].mxu0
    %v981 = vpop.f32.mrb[0].mxu0
    %v982 = vadd.f32 0.0, %v981
    %v983 = vpop.f32.mrb[0].mxu0
    %984 = vmatprep.mubr.bf16.mxu0 0
    %985 = vmatmul.mubr.bf16.gmra.mrb[0].mxu0 %v904
    %v986 = vpop.f32.mrb[0].mxu0
    %v987 = vadd.f32 0.0, %v986
    %v988 = vpop.f32.mrb[0].mxu0
    %v989 = vpop.f32.mrb[0].mxu0
    %v990 = vadd.f32 0.0, %v989
    %v991 = vpop.f32.mrb[0].mxu0
    %992 = vmatprep.mubr.bf16.mxu0 0
    %993 = vmatmul.mubr.bf16.gmra.mrb[0].mxu0 %v907
    %v994 = vpop.f32.mrb[0].mxu0
    %v995 = vadd.f32 0.0, %v994
    %v996 = vpop.f32.mrb[0].mxu0
    %v997 = vpop.f32.mrb[0].mxu0
    %v998 = vadd.f32 0.0, %v997
    %v999 = vpop.f32.mrb[0].mxu0
    %1000 = vmatprep.mubr.bf16.mxu0 0
    %1001 = vmatmul.mubr.bf16.gmra.mrb[0].mxu0 %v910
    %v1002 = vpop.f32.mrb[0].mxu0
    %v1003 = vadd.f32 0.0, %v1002
    %v1004 = vpop.f32.mrb[0].mxu0
    %v1005 = vpop.f32.mrb[0].mxu0
    %v1006 = vadd.f32 0.0, %v1005
    %v1007 = vpop.f32.mrb[0].mxu0
    %1008 = vdwg.mxu0
    %v1009 = vmul.f32 %v947, %v111
    %v1010 = vmul.f32 %v950, %v112
    %v1011 = vmul.f32 %v955, %v113
    %v1012 = vmul.f32 %v958, %v114
    %v1013 = vmul.f32 %v963, %v115
    %v1014 = vmul.f32 %v966, %v116
    %v1015 = vmul.f32 %v971, %v117
    %v1016 = vmul.f32 %v974, %v118
    %v1017 = vmul.f32 %v979, %v119
    %v1018 = vmul.f32 %v982, %v120
    %v1019 = vmul.f32 %v987, %v121
    %v1020 = vmul.f32 %v990, %v122
    %v1021 = vmul.f32 %v995, %v123
    %v1022 = vmul.f32 %v998, %v124
    %v1023 = vmul.f32 %v1003, %v125
    %v1024 = vmul.f32 %v1006, %v126
    %v1025 = vpack.c.bf16 %v1010, %v1009
    %v1026 = vpack.c.bf16 %v1012, %v1011
    %v1027 = vpack.c.bf16 %v1014, %v1013
    %v1028 = vpack.c.bf16 %v1016, %v1015
    %v1029 = vpack.c.bf16 %v1018, %v1017
    %v1030 = vpack.c.bf16 %v1020, %v1019
    %v1031 = vpack.c.bf16 %v1022, %v1021
    %v1032 = vpack.c.bf16 %v1024, %v1023
    %1033 = vmatprep.subr.bf16.mxu0 0
    %1034 = vmatpush1.bf16.msra.mxu0 %v1025
    %1035 = vmatprep.subr.bf16.mxu0 0
    %1036 = vmatpush1.bf16.msra.mxu0 %v1026
    %1037 = vmatprep.subr.bf16.mxu0 0
    %1038 = vmatpush1.bf16.msra.mxu0 %v1027
    %1039 = vmatprep.subr.bf16.mxu0 0
    %1040 = vmatpush1.bf16.msra.mxu0 %v1028
    %1041 = vmatprep.subr.bf16.mxu0 0
    %1042 = vmatpush1.bf16.msra.mxu0 %v1029
    %1043 = vmatprep.subr.bf16.mxu0 0
    %1044 = vmatpush1.bf16.msra.mxu0 %v1030
    %1045 = vmatprep.subr.bf16.mxu0 0
    %1046 = vmatpush1.bf16.msra.mxu0 %v1031
    %1047 = vmatprep.subr.bf16.mxu0 0
    %1048 = vmatpush1.bf16.msra.mxu0 %v1032
    %1049 = vmatprep.subr.bf16.mxu0 0
    %1050 = vmatpush1.bf16.msra.mxu0 0
    %1051 = vmatprep.subr.bf16.mxu0 0
    %1052 = vmatpush1.bf16.msra.mxu0 0
    %1053 = vmatprep.subr.bf16.mxu0 0
    %1054 = vmatpush1.bf16.msra.mxu0 0
    %1055 = vmatprep.subr.bf16.mxu0 0
    %1056 = vmatpush1.bf16.msra.mxu0 0
    %1057 = vmatprep.subr.bf16.mxu0 0
    %1058 = vmatpush1.bf16.msra.mxu0 0
    %1059 = vmatprep.subr.bf16.mxu0 0
    %1060 = vmatpush1.bf16.msra.mxu0 0
    %1061 = vmatprep.subr.bf16.mxu0 0
    %1062 = vmatpush1.bf16.msra.mxu0 0
    %1063 = vmatprep.subr.bf16.mxu0 0
    %1064 = vmatpush1.bf16.msra.mxu0 0
    %1065 = vmatprep.mubr.bf16.mxu0 0
    %1066 = vmatmul.mubr.bf16.gmra.mrb[0].mxu0 %v200
    %v1067 = vpop.f32.mrb[0].mxu0
    %v1068 = vadd.f32 %v1009, %v1067
    %v1069 = vpop.f32.mrb[0].mxu0
    %v1070 = vpop.f32.mrb[0].mxu0
    %v1071 = vadd.f32 %v1010, %v1070
    %v1072 = vpop.f32.mrb[0].mxu0
    %1073 = vmatprep.mubr.bf16.mxu0 0
    %1074 = vmatmul.mubr.bf16.gmra.mrb[0].mxu0 %v201
    %v1075 = vpop.f32.mrb[0].mxu0
    %v1076 = vadd.f32 %v1011, %v1075
    %v1077 = vpop.f32.mrb[0].mxu0
    %v1078 = vpop.f32.mrb[0].mxu0
    %v1079 = vadd.f32 %v1012, %v1078
    %v1080 = vpop.f32.mrb[0].mxu0
    %1081 = vmatprep.mubr.bf16.mxu0 0
    %1082 = vmatmul.mubr.bf16.gmra.mrb[0].mxu0 %v202
    %v1083 = vpop.f32.mrb[0].mxu0
    %v1084 = vadd.f32 %v1013, %v1083
    %v1085 = vpop.f32.mrb[0].mxu0
    %v1086 = vpop.f32.mrb[0].mxu0
    %v1087 = vadd.f32 %v1014, %v1086
    %v1088 = vpop.f32.mrb[0].mxu0
    %1089 = vmatprep.mubr.bf16.mxu0 0
    %1090 = vmatmul.mubr.bf16.gmra.mrb[0].mxu0 %v203
    %v1091 = vpop.f32.mrb[0].mxu0
    %v1092 = vadd.f32 %v1015, %v1091
    %v1093 = vpop.f32.mrb[0].mxu0
    %v1094 = vpop.f32.mrb[0].mxu0
    %v1095 = vadd.f32 %v1016, %v1094
    %v1096 = vpop.f32.mrb[0].mxu0
    %1097 = vmatprep.mubr.bf16.mxu0 0
    %1098 = vmatmul.mubr.bf16.gmra.mrb[0].mxu0 %v204
    %v1099 = vpop.f32.mrb[0].mxu0
    %v1100 = vadd.f32 %v1017, %v1099
    %v1101 = vpop.f32.mrb[0].mxu0
    %v1102 = vpop.f32.mrb[0].mxu0
    %v1103 = vadd.f32 %v1018, %v1102
    %v1104 = vpop.f32.mrb[0].mxu0
    %1105 = vmatprep.mubr.bf16.mxu0 0
    %1106 = vmatmul.mubr.bf16.gmra.mrb[0].mxu0 %v205
    %v1107 = vpop.f32.mrb[0].mxu0
    %v1108 = vadd.f32 %v1019, %v1107
    %v1109 = vpop.f32.mrb[0].mxu0
    %v1110 = vpop.f32.mrb[0].mxu0
    %v1111 = vadd.f32 %v1020, %v1110
    %v1112 = vpop.f32.mrb[0].mxu0
    %1113 = vmatprep.mubr.bf16.mxu0 0
    %1114 = vmatmul.mubr.bf16.gmra.mrb[0].mxu0 %v206
    %v1115 = vpop.f32.mrb[0].mxu0
    %v1116 = vadd.f32 %v1021, %v1115
    %v1117 = vpop.f32.mrb[0].mxu0
    %v1118 = vpop.f32.mrb[0].mxu0
    %v1119 = vadd.f32 %v1022, %v1118
    %v1120 = vpop.f32.mrb[0].mxu0
    %1121 = vmatprep.mubr.bf16.mxu0 0
    %1122 = vmatmul.mubr.bf16.gmra.mrb[0].mxu0 %v207
    %v1123 = vpop.f32.mrb[0].mxu0
    %v1124 = vadd.f32 %v1023, %v1123
    %v1125 = vpop.f32.mrb[0].mxu0
    %v1126 = vpop.f32.mrb[0].mxu0
    %v1127 = vadd.f32 %v1024, %v1126
    %v1128 = vpop.f32.mrb[0].mxu0
    %1129 = vdwg.mxu0
    %v1130 = vmul.f32 %v1068, %v111
    %v1131 = vmul.f32 %v1071, %v112
    %v1132 = vmul.f32 %v1076, %v113
    %v1133 = vmul.f32 %v1079, %v114
    %v1134 = vmul.f32 %v1084, %v115
    %v1135 = vmul.f32 %v1087, %v116
    %v1136 = vmul.f32 %v1092, %v117
    %v1137 = vmul.f32 %v1095, %v118
    %v1138 = vmul.f32 %v1100, %v119
    %v1139 = vmul.f32 %v1103, %v120
    %v1140 = vmul.f32 %v1108, %v121
    %v1141 = vmul.f32 %v1111, %v122
    %v1142 = vmul.f32 %v1116, %v123
    %v1143 = vmul.f32 %v1119, %v124
    %v1144 = vmul.f32 %v1124, %v125
    %v1145 = vmul.f32 %v1127, %v126
    %v1146 = vlaneseq
    %v1147 = vshrl.u32 %v1146, 7
    %v1148 = vsub.s32 0, %v1147
    %v1149 = vrot.slane %v863, %v1148
    %v1150 = vmul.f32 %v1130, %v1149
    %v1151 = vmul.f32 %v1131, %v1149
    %v1152 = vmul.f32 %v1132, %v1149
    %v1153 = vmul.f32 %v1133, %v1149
    %v1154 = vmul.f32 %v1134, %v1149
    %v1155 = vmul.f32 %v1135, %v1149
    %v1156 = vmul.f32 %v1136, %v1149
    %v1157 = vmul.f32 %v1137, %v1149
    %v1158 = vmul.f32 %v1138, %v1149
    %v1159 = vmul.f32 %v1139, %v1149
    %v1160 = vmul.f32 %v1140, %v1149
    %v1161 = vmul.f32 %v1141, %v1149
    %v1162 = vmul.f32 %v1142, %v1149
    %v1163 = vmul.f32 %v1143, %v1149
    %v1164 = vmul.f32 %v1144, %v1149
    %v1165 = vmul.f32 %v1145, %v1149
    %v1166 = vlaneseq
    %v1167 = vshrl.u32 %v1166, 7
    %v1168 = vsub.s32 1, %v1167
    %v1169 = vrot.slane %v863, %v1168
    %v1170 = vadd.f32 %v1150, %v1169
    %v1171 = vadd.f32 %v1151, %v1169
    %v1172 = vadd.f32 %v1152, %v1169
    %v1173 = vadd.f32 %v1153, %v1169
    %v1174 = vadd.f32 %v1154, %v1169
    %v1175 = vadd.f32 %v1155, %v1169
    %v1176 = vadd.f32 %v1156, %v1169
    %v1177 = vadd.f32 %v1157, %v1169
    %v1178 = vadd.f32 %v1158, %v1169
    %v1179 = vadd.f32 %v1159, %v1169
    %v1180 = vadd.f32 %v1160, %v1169
    %v1181 = vadd.f32 %v1161, %v1169
    %v1182 = vadd.f32 %v1162, %v1169
    %v1183 = vadd.f32 %v1163, %v1169
    %v1184 = vadd.f32 %v1164, %v1169
    %v1185 = vadd.f32 %v1165, %v1169
    %1186 = vst [vmem:[#allocation2] sm:$0xff] %v1170
    %1187 = vst [vmem:[#allocation2 + $0x8] sm:$0xff] %v1171
    %1188 = vst [vmem:[#allocation2 + $0x10] sm:$0xff] %v1172
    %1189 = vst [vmem:[#allocation2 + $0x18] sm:$0xff] %v1173
    %1190 = vst [vmem:[#allocation2 + $0x20] sm:$0xff] %v1174
    %1191 = vst [vmem:[#allocation2 + $0x28] sm:$0xff] %v1175
    %1192 = vst [vmem:[#allocation2 + $0x30] sm:$0xff] %v1176
    %1193 = vst [vmem:[#allocation2 + $0x38] sm:$0xff] %v1177
    %1194 = vst [vmem:[#allocation2 + $0x40] sm:$0xff] %v1178
    %1195 = vst [vmem:[#allocation2 + $0x48] sm:$0xff] %v1179
    %1196 = vst [vmem:[#allocation2 + $0x50] sm:$0xff] %v1180
    %1197 = vst [vmem:[#allocation2 + $0x58] sm:$0xff] %v1181
    %1198 = vst [vmem:[#allocation2 + $0x60] sm:$0xff] %v1182
    %1199 = vst [vmem:[#allocation2 + $0x68] sm:$0xff] %v1183
    %1200 = vst [vmem:[#allocation2 + $0x70] sm:$0xff] %v1184
    %1201 = vst [vmem:[#allocation2 + $0x78] sm:$0xff] %v1185
    // Predicated region
    $region34: #{tpu_custom_call.1} parent=1 // pred_check
      _
    $region35: #{tpu_custom_call.1} parent=1 // pred_check_branch
      %1203 = sbr.rel (0) target = $region37
    $region36: #{tpu_custom_call.1} parent=1 // pred_region
      %s1205 = ssub.s32 2048, 2048
      %1206 = vsyncadd [#allocation3], %s1205
      %s1207 = sshll.u32 [#allocation2], 4
      %s1208 = int_to_ptr.vmem [resolvable:$true] %s1207
      %1213 = dma.vmem_to_hbm [thread:$0]  %s1208, 2048, %s8, [#allocation3], 128, 128, 8
    $region37: #{tpu_custom_call.1} parent=1 // pred_fallthru
      _
    // Predicated region
    $region38: #{tpu_custom_call.1} parent=1 // pred_check
      _
    $region39: #{tpu_custom_call.1} parent=1 // pred_check_branch
      %1215 = sbr.rel (0) target = $region41
    $region40: #{tpu_custom_call.1} parent=1 // pred_region
      %1216 = dma.done [#allocation3], 2048
    $region41: #{tpu_custom_call.1} parent=1 // pred_fallthru
      _
    %1217 = vsyncpa [#allocation3], 1

</llo_original>
